<compile_context>
chip_gen: v7x
topology: tpu7x:2x2x1
jax: 0.10.0
libtpu: 0.0.40
codegen_flags: <defaults>
</compile_context>

<pallas_src>
import functools

import jax
import jax.numpy as jnp
from jax import lax
from jax.experimental import pallas as pl
from jax.experimental.pallas import tpu as pltpu


# ---------------------------------------------------------------------------
# Pass 1: per-(B, C) first/second moments of x, accumulated over N tiles.
# ---------------------------------------------------------------------------
def _make_stats_kernel(n_tile, lane):
    assert n_tile % lane == 0
    nchunks = n_tile // lane

    def kernel(x_ref, mom_ref, s_ref, q_ref):
        n_idx = pl.program_id(1)

        @pl.when(n_idx == 0)
        def _init():
            s_ref[...] = jnp.zeros_like(s_ref)
            q_ref[...] = jnp.zeros_like(q_ref)

        s = s_ref[...]
        q = q_ref[...]
        # Lane-aligned chunked accumulation: pure VPU adds per step (no
        # cross-lane XLU reduction and no lane-sparse output RMW per step).
        if nchunks <= 16:
            for k in range(nchunks):
                chunk = x_ref[:, :, k * lane:(k + 1) * lane].astype(jnp.float32)
                s = s + chunk
                q = q + chunk * chunk
        else:
            def body(k, carry):
                s_c, q_c = carry
                off = pl.multiple_of(k * lane, lane)
                chunk = x_ref[:, :, pl.ds(off, lane)].astype(jnp.float32)
                return s_c + chunk, q_c + chunk * chunk
            s, q = lax.fori_loop(0, nchunks, body, (s, q))
        s_ref[...] = s
        q_ref[...] = q

        # Finalize: single cross-lane reduce + store of the merged moments,
        # only on the last step of the reduction ("arbitrary") axis.
        @pl.when(n_idx == pl.num_programs(1) - 1)
        def _finalize():
            s_tot = jnp.sum(s_ref[...], axis=-1)          # (b_tile, C)
            q_tot = jnp.sum(q_ref[...], axis=-1)          # (b_tile, C)
            mom_ref[:, 0:1, :] = s_tot[:, None, :]
            mom_ref[:, 1:2, :] = q_tot[:, None, :]

    return kernel


# ---------------------------------------------------------------------------
# Pass 2: out = scale * x + shift with per-(B, C) scale/shift (BN folded in).
# ---------------------------------------------------------------------------
def _apply_kernel(x_ref, scale_ref, shift_ref, o_ref):
    o_ref[...] = (scale_ref[...] * x_ref[...].astype(jnp.float32)
                  + shift_ref[...]).astype(o_ref.dtype)


# ---------------------------------------------------------------------------
# Tiling helpers.
# ---------------------------------------------------------------------------
def _vmem_capacity_bytes():
    try:
        info = pltpu.get_tpu_info()
        cap = int(getattr(info, "vmem_capacity_bytes", 0) or 0)
        if cap > 0:
            return cap
    except Exception:
        pass
    return 64 * 1024 * 1024        # conservative: v7x per-TensorCore VMEM


def _pick_n_tile(C, N, elem_budget):
    """Return (n_tile, N_pad).  n_tile is the full N (small case) or a multiple
    of 128; N_pad is N rounded up to a multiple of n_tile (zero-padded)."""
    if C * N <= elem_budget and (N % 128 == 0 or N <= 1024):
        return N, N
    cap = max(128, (min(elem_budget // max(C, 1), 32 * 1024) // 128) * 128)
    d = cap
    while d >= 128:                 # prefer a 128-multiple that divides N exactly
        if N % d == 0:
            return d, N
        d -= 128
    # No nice divisor: bounded tile + zero-padded tail (never a full-N block).
    # TODO(synk): a masked ragged-tail kernel would avoid the pad copy of x.
    n_up = ((N + 127) // 128) * 128
    n_tile = min(cap, n_up)
    n_pad = ((N + n_tile - 1) // n_tile) * n_tile
    return n_tile, n_pad


def _pick_b_tile(B, C, n_tile, elem_budget):
    """Largest divisor of B keeping a block within budget, while keeping >= 2
    blocks along the batch axis (v7x megacore shards the 'parallel' axis)."""
    cap = max(1, elem_budget // max(C * n_tile, 1))
    b_max = max(1, min(B // 2 if B >= 2 else 1, cap))
    bt = 1
    for d in range(1, b_max + 1):
        if B % d == 0:
            bt = d
    return bt
    # TODO(synk): when B == 1, add an outer parallel split of N (partial moments
    # summed on host) so both v7x TensorCores participate in pass 1.


# ---------------------------------------------------------------------------
# Wrapper.
# ---------------------------------------------------------------------------
def geometry_affine(x, w1, b1, w2, b2, bn_w, bn_b, *, eps=1e-5,
                    block_budget_bytes=None):
    """x: (B, C, N).  w1: (C, 2C), b1: (1, 2C), w2: (2C, 2C), b2: (1, 2C),
    bn_w / bn_b: (C, 1).  Linear weights are the PyTorch weights pre-transposed."""
    B, C, N = x.shape

    vmem_cap = _vmem_capacity_bytes()
    if block_budget_bytes is None:
        # ~8 MiB blocks on 128 MiB-VMEM chips (v5e/v6e), ~4 MiB on v7x (64 MiB).
        block_budget_bytes = min(8 * 1024 * 1024, vmem_cap // 16)
    elem_budget = max(128, block_budget_bytes // 4)

    n_tile, n_pad = _pick_n_tile(C, N, elem_budget)
    b_tile = _pick_b_tile(B, C, n_tile, elem_budget)
    n_steps = n_pad // n_tile
    b_steps = B // b_tile
    lane = 128 if n_tile % 128 == 0 else n_tile

    if n_pad != N:
        x_in = jnp.pad(x, ((0, 0), (0, 0), (0, n_pad - N)))
    else:
        x_in = x

    block_bytes = 4 * b_tile * C * n_tile
    scratch_bytes = 2 * 4 * b_tile * C * lane
    # Pass 2 holds ~2x in + 2x out blocks plus resident tables; cap the scoped
    # limit well below physical VMEM (critical on v7x: 64 MiB per core).
    vmem_limit = int(min(int(0.75 * vmem_cap),
                         max(32 * 1024 * 1024,
                             6 * block_bytes + scratch_bytes + (4 << 20))))

    x_spec = pl.BlockSpec((b_tile, C, n_tile), lambda bb, nn: (bb, 0, nn))
    # Per-(b, C) tables: constant block index along N -> resident across N tiles.
    # (Optionally pipeline_mode=pl.Buffered(3) on x_spec for v5e small blocks.)
    tbl_spec = pl.BlockSpec((b_tile, C, 1), lambda bb, nn: (bb, 0, 0))
    mom_spec = pl.BlockSpec((b_tile, 2, C), lambda bb, nn: (bb, 0, 0))

    itemsize = jnp.dtype(x.dtype).itemsize
    bytes_x = itemsize * B * C * n_pad

    # ---- Pass 1: streaming reduction of x to per-(B, C) moments -------------
    moments = pl.pallas_call(
        _make_stats_kernel(n_tile, lane),
        out_shape=jax.ShapeDtypeStruct((B, 2, C), jnp.float32),
        grid=(b_steps, n_steps),
        in_specs=[x_spec],
        out_specs=mom_spec,
        scratch_shapes=[pltpu.VMEM((b_tile, C, lane), jnp.float32),
                        pltpu.VMEM((b_tile, C, lane), jnp.float32)],
        compiler_params=pltpu.CompilerParams(
            dimension_semantics=("parallel", "arbitrary"),
            vmem_limit_bytes=vmem_limit),
        cost_estimate=pl.CostEstimate(flops=3 * B * C * n_pad,
                                      transcendentals=0,
                                      bytes_accessed=bytes_x + 8 * B * C),
    )(x_in)

    # ---- Host side (plain XLA): tiny MLP + analytic BN stats + folding ------
    sum_x = moments[:, 0, :]                                 # (B, C)
    sumsq_x = moments[:, 1, :]                               # (B, C)
    inv_n = 1.0 / N                                          # true N (zero pad adds 0)
    mean_x = sum_x * inv_n
    # TODO(synk): for data with very large means switch pass 1 to a shifted /
    # Welford accumulation; the difference-of-moments form can cancel in f32.
    var_x = jnp.maximum(sumsq_x * inv_n - mean_x * mean_x, 0.0)

    h = jnp.maximum(mean_x @ w1 + b1, 0.0)                   # (B, 2C)
    params = h @ w2 + b2                                     # (B, 2C)
    gamma = params[:, :C]                                    # (B, C)
    beta = params[:, C:]                                     # (B, C)

    # BatchNorm1d training-mode stats of y = gamma*x + beta over (B, N),
    # computed analytically from per-(B, C) moments (biased variance).
    mean_y = gamma * mean_x + beta                           # (B, C)
    mu = jnp.mean(mean_y, axis=0)                            # (C,)
    var = jnp.mean(gamma * gamma * var_x + (mean_y - mu[None, :]) ** 2, axis=0)

    inv_std = lax.rsqrt(var + eps)                           # (C,)
    bnw = bn_w.reshape(C)
    bnb = bn_b.reshape(C)
    scale = (bnw * inv_std)[None, :] * gamma                 # (B, C)
    shift = (bnw * inv_std)[None, :] * (beta - mu[None, :]) + bnb[None, :]

    scale = scale.reshape(B, C, 1).astype(jnp.float32)
    shift = shift.reshape(B, C, 1).astype(jnp.float32)

    # ---- Pass 2: streaming apply, one FMA per element ------------------------
    out = pl.pallas_call(
        _apply_kernel,
        out_shape=jax.ShapeDtypeStruct((B, C, n_pad), x.dtype),
        grid=(b_steps, n_steps),
        in_specs=[x_spec, tbl_spec, tbl_spec],
        out_specs=x_spec,
        compiler_params=pltpu.CompilerParams(
            dimension_semantics=("parallel", "parallel"),
            vmem_limit_bytes=vmem_limit),
        cost_estimate=pl.CostEstimate(flops=2 * B * C * n_pad,
                                      transcendentals=0,
                                      bytes_accessed=2 * bytes_x + 8 * B * C),
    )(x_in, scale, shift)

    if n_pad != N:
        out = out[:, :, :N]
    return out


# ---------------------------------------------------------------------------
# Reference + test harness.
# ---------------------------------------------------------------------------
def _reference(x, w1, b1, w2, b2, bn_w, bn_b, eps=1e-5):
    gfeat = jnp.mean(x, axis=2)
    h = jnp.maximum(gfeat @ w1 + b1, 0.0)
    params = h @ w2 + b2
    C = x.shape[1]
    gamma = params[:, :C][:, :, None]
    beta = params[:, C:][:, :, None]
    y = gamma * x + beta
    mu = jnp.mean(y, axis=(0, 2), keepdims=True)
    var = jnp.mean((y - mu) ** 2, axis=(0, 2), keepdims=True)
    y_hat = (y - mu) / jnp.sqrt(var + eps)
    return bn_w[None, :, :] * y_hat + bn_b[None, :, :]


def _make_inputs(key, B, C, N, mean=0.0):
    kx, k1, k2, k3, k4, k5, k6 = jax.random.split(key, 7)
    x = mean + jax.random.normal(kx, (B, C, N), dtype=jnp.float32)
    # nn.Linear(C, 2C): weight (2C, C), bias (2C) -> stored transposed (C, 2C)
    w1 = jax.random.normal(k1, (C, 2 * C), dtype=jnp.float32) * 0.1
    b1 = jax.random.normal(k2, (1, 2 * C), dtype=jnp.float32) * 0.1
    w2 = jax.random.normal(k3, (2 * C, 2 * C), dtype=jnp.float32) * 0.1
    b2 = jax.random.normal(k4, (1, 2 * C), dtype=jnp.float32) * 0.1
    bn_w = 1.0 + 0.1 * jax.random.normal(k5, (C, 1), dtype=jnp.float32)
    bn_b = 0.1 * jax.random.normal(k6, (C, 1), dtype=jnp.float32)
    return (x, w1, b1, w2, b2, bn_w, bn_b)


if __name__ == "__main__":
    key = jax.random.PRNGKey(0)
    k_a, k_b = jax.random.split(key)

    # Test 1: small shapes consistent with the module forward (B, C, N).
    args = _make_inputs(k_a, 2, 4, 16)
    out = jax.block_until_ready(jax.jit(geometry_affine)(*args))
    ref = _reference(*args)
    assert out.shape == (2, 4, 16)
    assert jnp.allclose(out, ref, atol=1e-4, rtol=1e-4), "mismatch (test 1)"

    # Test 2: nonzero-mean data + ragged N (forces tiling + zero-padded tail
    # and the multi-step accumulate/finalize path via a tiny block budget).
    args2 = _make_inputs(k_b, 2, 8, 400, mean=3.0)
    fn2 = jax.jit(functools.partial(geometry_affine, block_budget_bytes=8 * 1024))
    out2 = jax.block_until_ready(fn2(*args2))
    ref2 = _reference(*args2)
    assert out2.shape == (2, 8, 400)
    assert jnp.allclose(out2, ref2, atol=2e-3, rtol=2e-3), "mismatch (test 2)"

    print("KERNEL_OK")
</pallas_src>

<mosaic_0001>
module attributes {stable_mosaic.version = 11 : i64} {
  func.func @kernel(%arg0: i32, %arg1: i32, %arg2: memref<1x4x16xf32, #tpu.memory_space<vmem>>, %arg3: memref<1x2x4xf32, #tpu.memory_space<vmem>>, %arg4: memref<1x4x16xf32, #tpu.memory_space<vmem>>, %arg5: memref<1x4x16xf32, #tpu.memory_space<vmem>>) attributes {dimension_semantics = [#tpu.dimension_semantics<parallel>, #tpu.dimension_semantics<arbitrary>], iteration_bounds = array<i64: 2, 1>, scalar_prefetch = 0 : i64, scratch_operands = 2 : i64, tpu.core_type = #tpu.core_type<tc>, window_params = [{transform_indices = @transform_0, window_bounds = array<i64: 1, 4, 16>}, {transform_indices = @transform_1, window_bounds = array<i64: 1, 2, 4>}]} {
    %c0_i32 = arith.constant 0 : i32
    %0 = arith.cmpi eq, %arg1, %c0_i32 : i32
    %1 = arith.extui %0 : i1 to i32
    %c0_i32_0 = arith.constant 0 : i32
    %2 = arith.cmpi ne, %1, %c0_i32_0 : i32
    scf.if %2 {
      %cst = arith.constant 0.000000e+00 : f32
      %14 = vector.broadcast %cst : f32 to vector<1x4x16xf32>
      %c0_17 = arith.constant 0 : index
      %c0_18 = arith.constant 0 : index
      %c0_19 = arith.constant 0 : index
      %15 = vector.load %arg4[%c0_17, %c0_18, %c0_19] : memref<1x4x16xf32, #tpu.memory_space<vmem>>, vector<1x4x16xf32>
      tpu.vector_store %arg4[%c0_17, %c0_18, %c0_19], %14 {strides = array<i32>} : memref<1x4x16xf32, #tpu.memory_space<vmem>>, vector<1x4x16xf32>,
      %cst_20 = arith.constant 0.000000e+00 : f32
      %16 = vector.broadcast %cst_20 : f32 to vector<1x4x16xf32>
      %c0_21 = arith.constant 0 : index
      %c0_22 = arith.constant 0 : index
      %c0_23 = arith.constant 0 : index
      %17 = vector.load %arg5[%c0_21, %c0_22, %c0_23] : memref<1x4x16xf32, #tpu.memory_space<vmem>>, vector<1x4x16xf32>
      tpu.vector_store %arg5[%c0_21, %c0_22, %c0_23], %16 {strides = array<i32>} : memref<1x4x16xf32, #tpu.memory_space<vmem>>, vector<1x4x16xf32>,
    } else {
    }
    %c0 = arith.constant 0 : index
    %c0_1 = arith.constant 0 : index
    %c0_2 = arith.constant 0 : index
    %3 = vector.load %arg4[%c0, %c0_1, %c0_2] : memref<1x4x16xf32, #tpu.memory_space<vmem>>, vector<1x4x16xf32>
    %c0_3 = arith.constant 0 : index
    %c0_4 = arith.constant 0 : index
    %c0_5 = arith.constant 0 : index
    %4 = vector.load %arg5[%c0_3, %c0_4, %c0_5] : memref<1x4x16xf32, #tpu.memory_space<vmem>>, vector<1x4x16xf32>
    %c0_6 = arith.constant 0 : index
    %c0_7 = arith.constant 0 : index
    %c0_8 = arith.constant 0 : index
    %5 = vector.load %arg2[%c0_6, %c0_7, %c0_8] : memref<1x4x16xf32, #tpu.memory_space<vmem>>, vector<1x4x16xf32>
    %6 = arith.addf %3, %5 : vector<1x4x16xf32>
    %7 = arith.mulf %5, %5 : vector<1x4x16xf32>
    %8 = arith.addf %4, %7 : vector<1x4x16xf32>
    %c0_9 = arith.constant 0 : index
    %c0_10 = arith.constant 0 : index
    %c0_11 = arith.constant 0 : index
    %9 = vector.load %arg4[%c0_9, %c0_10, %c0_11] : memref<1x4x16xf32, #tpu.memory_space<vmem>>, vector<1x4x16xf32>
    tpu.vector_store %arg4[%c0_9, %c0_10, %c0_11], %6 {strides = array<i32>} : memref<1x4x16xf32, #tpu.memory_space<vmem>>, vector<1x4x16xf32>,
    %c0_12 = arith.constant 0 : index
    %c0_13 = arith.constant 0 : index
    %c0_14 = arith.constant 0 : index
    %10 = vector.load %arg5[%c0_12, %c0_13, %c0_14] : memref<1x4x16xf32, #tpu.memory_space<vmem>>, vector<1x4x16xf32>
    tpu.vector_store %arg5[%c0_12, %c0_13, %c0_14], %8 {strides = array<i32>} : memref<1x4x16xf32, #tpu.memory_space<vmem>>, vector<1x4x16xf32>,
    %c0_i32_15 = arith.constant 0 : i32
    %11 = arith.cmpi eq, %arg1, %c0_i32_15 : i32
    %12 = arith.extui %11 : i1 to i32
    %c0_i32_16 = arith.constant 0 : i32
    %13 = arith.cmpi ne, %12, %c0_i32_16 : i32
    scf.if %13 {
      %c0_17 = arith.constant 0 : index
      %c0_18 = arith.constant 0 : index
      %c0_19 = arith.constant 0 : index
      %14 = vector.load %arg4[%c0_17, %c0_18, %c0_19] : memref<1x4x16xf32, #tpu.memory_space<vmem>>, vector<1x4x16xf32>
      %cst = arith.constant dense<0.000000e+00> : vector<1x4xf32>
      %15 = vector.multi_reduction <add>, %14, %cst [2] : vector<1x4x16xf32> to vector<1x4xf32>
      %c0_20 = arith.constant 0 : index
      %c0_21 = arith.constant 0 : index
      %c0_22 = arith.constant 0 : index
      %16 = vector.load %arg5[%c0_20, %c0_21, %c0_22] : memref<1x4x16xf32, #tpu.memory_space<vmem>>, vector<1x4x16xf32>
      %cst_23 = arith.constant dense<0.000000e+00> : vector<1x4xf32>
      %17 = vector.multi_reduction <add>, %16, %cst_23 [2] : vector<1x4x16xf32> to vector<1x4xf32>
      %18 = vector.shape_cast %15 : vector<1x4xf32> to vector<1x1x4xf32>
      %c0_24 = arith.constant 0 : index
      %c0_25 = arith.constant 0 : index
      %c0_26 = arith.constant 0 : index
      %19 = vector.load %arg3[%c0_24, %c0_25, %c0_26] : memref<1x2x4xf32, #tpu.memory_space<vmem>>, vector<1x1x4xf32>
      tpu.vector_store %arg3[%c0_24, %c0_25, %c0_26], %18 {strides = array<i32>} : memref<1x2x4xf32, #tpu.memory_space<vmem>>, vector<1x1x4xf32>,
      %20 = vector.shape_cast %17 : vector<1x4xf32> to vector<1x1x4xf32>
      %c0_27 = arith.constant 0 : index
      %c1 = arith.constant 1 : index
      %c0_28 = arith.constant 0 : index
      %21 = vector.load %arg3[%c0_27, %c1, %c0_28] : memref<1x2x4xf32, #tpu.memory_space<vmem>>, vector<1x1x4xf32>
      tpu.vector_store %arg3[%c0_27, %c1, %c0_28], %20 {strides = array<i32>} : memref<1x2x4xf32, #tpu.memory_space<vmem>>, vector<1x1x4xf32>,
    } else {
    }
    return
  }
  func.func @transform_0(%arg0: i32, %arg1: i32) -> (i32, i32, i32) {
    %c0_i32 = arith.constant 0 : i32
    %c0_i32_0 = arith.constant 0 : i32
    return %arg0, %c0_i32, %arg1 : i32, i32, i32
  }
  func.func @transform_1(%arg0: i32, %arg1: i32) -> (i32, i32, i32) {
    %c0_i32 = arith.constant 0 : i32
    %c0_i32_0 = arith.constant 0 : i32
    %c0_i32_1 = arith.constant 0 : i32
    return %arg0, %c0_i32, %c0_i32_0 : i32, i32, i32
  }
}

module attributes {stable_mosaic.version = 11 : i64} {
  func.func @_apply_kernel(%arg0: i32, %arg1: i32, %arg2: memref<1x4x16xf32, #tpu.memory_space<vmem>>, %arg3: memref<1x4x1xf32, #tpu.memory_space<vmem>>, %arg4: memref<1x4x1xf32, #tpu.memory_space<vmem>>, %arg5: memref<1x4x16xf32, #tpu.memory_space<vmem>>) attributes {dimension_semantics = [#tpu.dimension_semantics<parallel>, #tpu.dimension_semantics<parallel>], iteration_bounds = array<i64: 2, 1>, scalar_prefetch = 0 : i64, scratch_operands = 0 : i64, tpu.core_type = #tpu.core_type<tc>, window_params = [{transform_indices = @transform_0, window_bounds = array<i64: 1, 4, 16>}, {transform_indices = @transform_1, window_bounds = array<i64: 1, 4, 1>}, {transform_indices = @transform_2, window_bounds = array<i64: 1, 4, 1>}, {transform_indices = @transform_3, window_bounds = array<i64: 1, 4, 16>}]} {
    %c0 = arith.constant 0 : index
    %c0_0 = arith.constant 0 : index
    %c0_1 = arith.constant 0 : index
    %0 = vector.load %arg3[%c0, %c0_0, %c0_1] : memref<1x4x1xf32, #tpu.memory_space<vmem>>, vector<1x4x1xf32>
    %c0_2 = arith.constant 0 : index
    %c0_3 = arith.constant 0 : index
    %c0_4 = arith.constant 0 : index
    %1 = vector.load %arg2[%c0_2, %c0_3, %c0_4] : memref<1x4x16xf32, #tpu.memory_space<vmem>>, vector<1x4x16xf32>
    %2 = vector.broadcast %0 : vector<1x4x1xf32> to vector<1x4x16xf32>
    %3 = arith.mulf %2, %1 : vector<1x4x16xf32>
    %c0_5 = arith.constant 0 : index
    %c0_6 = arith.constant 0 : index
    %c0_7 = arith.constant 0 : index
    %4 = vector.load %arg4[%c0_5, %c0_6, %c0_7] : memref<1x4x1xf32, #tpu.memory_space<vmem>>, vector<1x4x1xf32>
    %5 = vector.broadcast %4 : vector<1x4x1xf32> to vector<1x4x16xf32>
    %6 = arith.addf %3, %5 : vector<1x4x16xf32>
    %c0_8 = arith.constant 0 : index
    %c0_9 = arith.constant 0 : index
    %c0_10 = arith.constant 0 : index
    %7 = vector.load %arg5[%c0_8, %c0_9, %c0_10] : memref<1x4x16xf32, #tpu.memory_space<vmem>>, vector<1x4x16xf32>
    tpu.vector_store %arg5[%c0_8, %c0_9, %c0_10], %6 {strides = array<i32>} : memref<1x4x16xf32, #tpu.memory_space<vmem>>, vector<1x4x16xf32>,
    return
  }
  func.func @transform_0(%arg0: i32, %arg1: i32) -> (i32, i32, i32) {
    %c0_i32 = arith.constant 0 : i32
    %c0_i32_0 = arith.constant 0 : i32
    return %arg0, %c0_i32, %arg1 : i32, i32, i32
  }
  func.func @transform_1(%arg0: i32, %arg1: i32) -> (i32, i32, i32) {
    %c0_i32 = arith.constant 0 : i32
    %c0_i32_0 = arith.constant 0 : i32
    %c0_i32_1 = arith.constant 0 : i32
    return %arg0, %c0_i32, %c0_i32_0 : i32, i32, i32
  }
  func.func @transform_2(%arg0: i32, %arg1: i32) -> (i32, i32, i32) {
    %c0_i32 = arith.constant 0 : i32
    %c0_i32_0 = arith.constant 0 : i32
    %c0_i32_1 = arith.constant 0 : i32
    return %arg0, %c0_i32, %c0_i32_0 : i32, i32, i32
  }
  func.func @transform_3(%arg0: i32, %arg1: i32) -> (i32, i32, i32) {
    %c0_i32 = arith.constant 0 : i32
    %c0_i32_0 = arith.constant 0 : i32
    return %arg0, %c0_i32, %arg1 : i32, i32, i32
  }
}

</mosaic_0001>

<llo_original>
// kernel: geometry_affine.2
$region0: #{geometry_affine.2}
  #allocation0 [shape = 'u32[]', space=smem, size = 0x4, offset = 0x4, fixed_abs, tag = 'smem constant byte address 0x4 - core index']
  #allocation1 [shape = 'u32[144,128]{1,0:T(1,128)}', space=vmem, size = 0x12000, scoped, tag = 'internal scratch']
  #allocation2 [shape = 'f32[1,4,16]{2,1,0:T(4,128)}', space=vmem, size = 0x800, scoped, tag = 'scratch operand']
  #allocation3 [shape = 'f32[1,4,16]{2,1,0:T(4,128)}', space=vmem, size = 0x800, scoped, tag = 'scratch operand']
  %s0 = inlined_call_operand.vmem [shape: f32[2,4,16], index: 0, kind: input, shape index: {}]
  %s1 = inlined_call_operand.vmem [shape: f32[2,2,4], index: 1, kind: output, shape index: {}]
  %s2 = sld [smem:[#allocation0]]
  $region45: #{geometry_affine.2} parent=0
    _
  %s4 = ssub.s32 1, %s2
  %s5 = scalar_select 0, %s4, %s2
  loop: start=0, step=1, limit=4
  $region2: #{geometry_affine.2} parent=0 // loop_pre_header
    _
  $region3: #{geometry_affine.2} parent=0 // loop_header
    %s7 = sphi 0, %s11
    %p8 = scmp.ge.s32.totalorder %s7, 4
    %s14 = sphi 0, %s26
    %s15 = sphi 0, %s22
    %s16 = sphi 0, %s14
    %s17 = sphi 0, %s15
    %s18 = sphi 0, %s16
    %s19 = sphi 0, %s17
    %s31 = sphi 0, %s33
    %s34 = sphi 0, %s31
    %s35 = sphi 0, %s34
    %s51 = sphi 0, %s35
    %s57 = sphi 0, %s59
    %s60 = sphi 0, %s57
    %s61 = sphi 0, %s60
    %s77 = sphi 0, %s61
  $region4: #{geometry_affine.2} parent=0 // loop_header_branch
    %10 = sbr.rel (%p8) target = $region8
  $region5: #{geometry_affine.2} parent=0 // loop_body
    %s12 = ssub.s32 %s7, 1
    %s13 = ssub.s32 %s7, 2
    %s20 = sadd.s32 1, %s15
    %p21 = scmp.ge.s32.totalorder %s20, 1
    %s22 = scalar_select %p21, 0, %s20
    %s23 = sadd.s32 1, %s14
    %s24 = scalar_select %p21, %s23, %s14
    %p25 = scmp.ge.s32.totalorder %s24, 2
    %s26 = scalar_select %p25, 0, %s24
    %s27 = ssub.s32 %s14, %s26
    %s28 = ssub.s32 %s15, %s22
    %s29 = sor.u32 %s27, %s28
    %p30 = scmp.eq.s32.totalorder %s29, 0
    %s32 = sadd.s32 %s31, 1
    %s33 = scalar_select %p30, %s31, %s32
    %p36 = pneg %p30
    %p37 = scmp.eq.s32.totalorder %s7, 1
    %p38 = por %p36, %p37
    %p39 = scmp.ne.s32.totalorder %s31, %s34
    %p40 = scmp.eq.s32.totalorder %s7, 0
    %p41 = por %p39, %p40
    %p42 = scmp.ne.s32.totalorder %s31, %s34
    %p43 = scmp.eq.s32.totalorder %s12, 1
    %p44 = por %p42, %p43
    %p45 = scmp.ne.s32.totalorder %s34, %s35
    %p46 = scmp.eq.s32.totalorder %s12, 0
    %p47 = por %p45, %p46
    %p48 = scmp.ne.s32.totalorder %s34, %s35
    %p49 = scmp.eq.s32.totalorder %s13, 1
    %p50 = por %p48, %p49
    %p52 = scmp.ne.s32.totalorder %s35, %s51
    %p53 = scmp.eq.s32.totalorder %s13, 0
    %p54 = por %p52, %p53
    %s55 = ssub.s32 %s14, %s26
    %p56 = scmp.eq.s32.totalorder %s55, 0
    %s58 = sadd.s32 %s57, 1
    %s59 = scalar_select %p56, %s57, %s58
    %p62 = pneg %p56
    %p63 = scmp.eq.s32.totalorder %s7, 1
    %p64 = por %p62, %p63
    %p65 = scmp.ne.s32.totalorder %s57, %s60
    %p66 = scmp.eq.s32.totalorder %s7, 0
    %p67 = por %p65, %p66
    %p68 = scmp.ne.s32.totalorder %s57, %s60
    %p69 = scmp.eq.s32.totalorder %s12, 1
    %p70 = por %p68, %p69
    %p71 = scmp.ne.s32.totalorder %s60, %s61
    %p72 = scmp.eq.s32.totalorder %s12, 0
    %p73 = por %p71, %p72
    %p74 = scmp.ne.s32.totalorder %s60, %s61
    %p75 = scmp.eq.s32.totalorder %s13, 1
    %p76 = por %p74, %p75
    %p78 = scmp.ne.s32.totalorder %s61, %s77
    %p79 = scmp.eq.s32.totalorder %s13, 0
    %p80 = por %p78, %p79
    %p81 = scmp.le.s32.totalorder 1, %s7
    %p82 = scmp.lt.s32.totalorder %s7, 3
    %p83 = pnand %p81, %p82
    %p84 = pneg %p83
    // Predicated region
    $region9: #{geometry_affine.2} parent=5 // pred_check
      _
    $region10: #{geometry_affine.2} parent=5 // pred_check_branch
      %86 = sbr.rel (%p83) target = $region12
    $region11: #{geometry_affine.2} parent=5 // pred_region
      %s87 = ssub.s32 %s7, 1
    $region12: #{geometry_affine.2} parent=5 // pred_fallthru
      _
    %p88 = scmp.lt.s32.totalorder %s7, 2
    // Predicated region
    $region13: #{geometry_affine.2} parent=5 // pred_check
      %p89 = pneg %p88
    $region14: #{geometry_affine.2} parent=5 // pred_check_branch
      %91 = sbr.rel (%p89) target = $region16
    $region15: #{geometry_affine.2} parent=5 // pred_region
      // Predicated region
      $region17: #{geometry_affine.2} parent=15 // pred_check
        %p92 = pneg %p41
      $region18: #{geometry_affine.2} parent=15 // pred_check_branch
        %94 = sbr.rel (%p92) target = $region20
      $region19: #{geometry_affine.2} parent=15 // pred_region
        %p95 = scmp.lt.s32.totalorder %s14, 1
        %s96 = scalar_select %p95, %s14, 1
        %p97 = scmp.lt.s32.totalorder %s15, 0
        %s98 = scalar_select %p97, %s15, 0
        %s99 = sadd.s32 %s98, %s96
        %s100 = smul.addr %s99, 4
        %s101 = scalar_lea.vmem %s0, %s100
      $region20: #{geometry_affine.2} parent=15 // pred_fallthru
        _
    $region16: #{geometry_affine.2} parent=5 // pred_fallthru
      _
    %p102 = scmp.le.s32.totalorder 1, %s7
    %p103 = scmp.lt.s32.totalorder %s7, 3
    %p104 = pnand %p102, %p103
    %p105 = pneg %p104
    // Predicated region
    $region21: #{geometry_affine.2} parent=5 // pred_check
      _
    $region22: #{geometry_affine.2} parent=5 // pred_check_branch
      %107 = sbr.rel (%p104) target = $region24
    $region23: #{geometry_affine.2} parent=5 // pred_region
      %s108 = ssub.s32 %s7, 1
      %p109 = scmp.lt.s32.totalorder %s16, 1
      %s110 = scalar_select %p109, %s16, 1
      %p111 = scmp.lt.s32.totalorder %s17, 0
      %s112 = scalar_select %p111, %s17, 0
      %s113 = sadd.s32 %s112, %s110
      %s114 = smul.addr %s113, 4
      %s115 = scalar_lea.vmem %s0, %s114
      %p116 = pneg %p47
      %p117 = pneg %p44
      %p118 = pneg %p73
      %p119 = pneg %p70
      %p120 = scmp.lt.s32.totalorder %s16, 1
      %s121 = scalar_select %p120, %s16, 1
      %s122 = smul.addr %s121, 2
      %s123 = scalar_lea.vmem %s1, %s122
      %p124 = scmp.lt.s32.totalorder %s16, 1
      %s125 = scalar_select %p124, %s16, 1
      %p126 = scmp.lt.s32.totalorder %s17, 0
      %s127 = scalar_select %p126, %s17, 0
      %s128 = sadd.s32 %s127, %s125
      %s129 = smul.addr %s128, 4
      %s130 = scalar_lea.vmem %s0, %s129
      %p131 = scmp.lt.s32.totalorder %s16, 1
      %s132 = scalar_select %p131, %s16, 1
      %s133 = smul.addr %s132, 2
      %s134 = scalar_lea.vmem %s1, %s133
      %p135 = scmp.eq.s32.totalorder %s17, 0
      // Predicated region
      $region25: #{geometry_affine.2} parent=23 // pred_check
        %p136 = pneg %p135
      $region26: #{geometry_affine.2} parent=23 // pred_check_branch
        %138 = sbr.rel (%p136) target = $region28
      $region27: #{geometry_affine.2} parent=23 // pred_region
        %vm139 = vcmask 125952
        %140 = vst.msk [vmem:[#allocation2] sm:$0xf] %vm139, 0.0
        %141 = vst.msk [vmem:[#allocation3] sm:$0xf] %vm139, 0.0
      $region28: #{geometry_affine.2} parent=23 // pred_fallthru
        _
      %v142 = vld [vmem:[#allocation2] sm:$0xf]
      %v143 = vld [vmem:[#allocation3] sm:$0xf]
      %v144 = vld [vmem:[%s130] sm:$0xf]
      %v145 = vadd.f32 %v142, %v144
      %v146 = vmul.f32 %v144, %v144
      %v147 = vadd.f32 %v143, %v146
      %vm148 = vcmask 125952
      %149 = vst.msk [vmem:[#allocation2] sm:$0xf] %vm148, %v145
      %150 = vst.msk [vmem:[#allocation3] sm:$0xf] %vm148, %v147
      // Predicated region
      $region29: #{geometry_affine.2} parent=23 // pred_check
        %p151 = pneg %p135
      $region30: #{geometry_affine.2} parent=23 // pred_check_branch
        %153 = sbr.rel (%p151) target = $region32
      $region31: #{geometry_affine.2} parent=23 // pred_region
        %v154 = vld [vmem:[#allocation2] sm:$0xf]
        %v155 = vsel %vm148, %v154, 0.0
        %156 = vadd.xlane.f32.xlu0 %v155
        %v157 = vpop.xlane.xlu0 %156
        %v158 = vld [vmem:[#allocation3] sm:$0xf]
        %v159 = vsel %vm148, %v158, 0.0
        %160 = vadd.xlane.f32.xlu0 %v159
        %v161 = vpop.xlane.xlu0 %160
        %v163 = vlaneseq
        %v164 = vand.u32 %v163, 127
        %v165 = vlaneseq
        %v166 = vshrl.u32 %v165, 7
        %v167 = vsub.s32 %v164, %v166
        %v168 = vrot.slane %v157, %v167
        %vm170 = vcmask 24576
        %171 = vst.msk [vmem:[%s134] sm:$0x1] %vm170, %v168
        %v173 = vlaneseq
        %v174 = vshrl.u32 %v173, 7
        %v175 = vsub.s32 %v164, %v174
        %v176 = vrot.slane %v161, %v175
        %178 = vst.msk [vmem:[%s134 + $0x1] sm:$0x1] %vm170, %v176
      $region32: #{geometry_affine.2} parent=23 // pred_fallthru
        _
      %p179 = scmp.lt.s32.totalorder %s16, 1
      %s180 = scalar_select %p179, %s16, 1
      %s181 = smul.addr %s180, 2
      %s182 = scalar_lea.vmem %s1, %s181
      // Predicated region
      $region33: #{geometry_affine.2} parent=23 // pred_check
        %p183 = pneg %p70
      $region34: #{geometry_affine.2} parent=23 // pred_check_branch
        %185 = sbr.rel (%p183) target = $region36
      $region35: #{geometry_affine.2} parent=23 // pred_region
        _
      $region36: #{geometry_affine.2} parent=23 // pred_fallthru
        _
    $region24: #{geometry_affine.2} parent=5 // pred_fallthru
      _
    %p186 = scmp.le.s32.totalorder 2, %s7
    // Predicated region
    $region37: #{geometry_affine.2} parent=5 // pred_check
      %p187 = pneg %p186
    $region38: #{geometry_affine.2} parent=5 // pred_check_branch
      %189 = sbr.rel (%p187) target = $region40
    $region39: #{geometry_affine.2} parent=5 // pred_region
      %s190 = ssub.s32 %s7, 2
      // Predicated region
      $region41: #{geometry_affine.2} parent=39 // pred_check
        %p191 = pneg %p76
      $region42: #{geometry_affine.2} parent=39 // pred_check_branch
        %193 = sbr.rel (%p191) target = $region44
      $region43: #{geometry_affine.2} parent=39 // pred_region
        %p194 = scmp.lt.s32.totalorder %s18, 1
        %s195 = scalar_select %p194, %s18, 1
        %s196 = smul.addr %s195, 2
        %s197 = scalar_lea.vmem %s1, %s196
      $region44: #{geometry_affine.2} parent=39 // pred_fallthru
        _
    $region40: #{geometry_affine.2} parent=5 // pred_fallthru
      _
  $region6: #{geometry_affine.2} parent=0 // loop_footer
    %s11 = sadd.s32 1, %s7
  $region7: #{geometry_affine.2} parent=0 // loop_footer_branch
    %6 = sbr.rel target = $region3
  $region8: #{geometry_affine.2} parent=0 // loop_exit
    _

// kernel: geometry_affine.3
$region0: #{geometry_affine.3}
  #allocation0 [shape = 'u32[]', space=smem, size = 0x4, offset = 0x4, fixed_abs, tag = 'smem constant byte address 0x4 - core index']
  #allocation1 [shape = 'u32[144,128]{1,0:T(1,128)}', space=vmem, size = 0x12000, scoped, tag = 'internal scratch']
  %s0 = inlined_call_operand.vmem [shape: f32[2,4,16], index: 0, kind: input, shape index: {}]
  %s1 = inlined_call_operand.vmem [shape: f32[2,4,1], index: 1, kind: input, shape index: {}]
  %s2 = inlined_call_operand.vmem [shape: f32[2,4,1], index: 2, kind: input, shape index: {}]
  %s3 = inlined_call_operand.hbm [shape: f32[2,4,16], index: 3, kind: output, shape index: {}]
  %s4 = sld [smem:[#allocation0]]
  $region45: #{geometry_affine.3} parent=0
    _
  %s6 = ssub.s32 1, %s4
  %s7 = scalar_select 0, %s6, %s4
  $region1: #{geometry_affine.3} parent=0
    #allocation2 [shape = 'u8[4096]{0}', space=vmem, size = 0x1000, scoped, tag = 'output window, operand 0']
    #allocation3 [shape = 's32[2]{0}', space=sflag, size = 0x8, scoped, tag = 'scoped memory for geometry_affine.3']
    %8 = vsyncpa [#allocation3], 0
    %s9 = scalar_lea.sflag [#allocation3], 1
    %10 = vsyncpa %s9, 0
    loop: start=0, step=1, limit=4
    $region2: #{geometry_affine.3} parent=1 // loop_pre_header
      _
    $region3: #{geometry_affine.3} parent=1 // loop_header
      %s12 = sphi 0, %s16
      %p13 = scmp.ge.s32.totalorder %s12, 4
      %s19 = sphi 0, %s31
      %s20 = sphi 0, %s27
      %s21 = sphi 0, %s19
      %s22 = sphi 0, %s20
      %s23 = sphi 0, %s21
      %s24 = sphi 0, %s22
      %s36 = sphi 0, %s38
      %s39 = sphi 0, %s36
      %s40 = sphi 0, %s39
      %s56 = sphi 0, %s40
      %s62 = sphi 0, %s64
      %s65 = sphi 0, %s62
      %s66 = sphi 0, %s65
      %s82 = sphi 0, %s66
      %s88 = sphi 0, %s90
      %s91 = sphi 0, %s88
      %s92 = sphi 0, %s91
      %s108 = sphi 0, %s92
      %s116 = sphi 0, %s118
      %s119 = sphi 0, %s116
      %s120 = sphi 0, %s119
      %s136 = sphi 0, %s120
    $region4: #{geometry_affine.3} parent=1 // loop_header_branch
      %15 = sbr.rel (%p13) target = $region8
    $region5: #{geometry_affine.3} parent=1 // loop_body
      %s17 = ssub.s32 %s12, 1
      %s18 = ssub.s32 %s12, 2
      %s25 = sadd.s32 1, %s20
      %p26 = scmp.ge.s32.totalorder %s25, 1
      %s27 = scalar_select %p26, 0, %s25
      %s28 = sadd.s32 1, %s19
      %s29 = scalar_select %p26, %s28, %s19
      %p30 = scmp.ge.s32.totalorder %s29, 2
      %s31 = scalar_select %p30, 0, %s29
      %s32 = ssub.s32 %s19, %s31
      %s33 = ssub.s32 %s20, %s27
      %s34 = sor.u32 %s32, %s33
      %p35 = scmp.eq.s32.totalorder %s34, 0
      %s37 = sadd.s32 %s36, 1
      %s38 = scalar_select %p35, %s36, %s37
      %p41 = pneg %p35
      %p42 = scmp.eq.s32.totalorder %s12, 1
      %p43 = por %p41, %p42
      %p44 = scmp.ne.s32.totalorder %s36, %s39
      %p45 = scmp.eq.s32.totalorder %s12, 0
      %p46 = por %p44, %p45
      %p47 = scmp.ne.s32.totalorder %s36, %s39
      %p48 = scmp.eq.s32.totalorder %s17, 1
      %p49 = por %p47, %p48
      %p50 = scmp.ne.s32.totalorder %s39, %s40
      %p51 = scmp.eq.s32.totalorder %s17, 0
      %p52 = por %p50, %p51
      %p53 = scmp.ne.s32.totalorder %s39, %s40
      %p54 = scmp.eq.s32.totalorder %s18, 1
      %p55 = por %p53, %p54
      %p57 = scmp.ne.s32.totalorder %s40, %s56
      %p58 = scmp.eq.s32.totalorder %s18, 0
      %p59 = por %p57, %p58
      %s60 = ssub.s32 %s19, %s31
      %p61 = scmp.eq.s32.totalorder %s60, 0
      %s63 = sadd.s32 %s62, 1
      %s64 = scalar_select %p61, %s62, %s63
      %p67 = pneg %p61
      %p68 = scmp.eq.s32.totalorder %s12, 1
      %p69 = por %p67, %p68
      %p70 = scmp.ne.s32.totalorder %s62, %s65
      %p71 = scmp.eq.s32.totalorder %s12, 0
      %p72 = por %p70, %p71
      %p73 = scmp.ne.s32.totalorder %s62, %s65
      %p74 = scmp.eq.s32.totalorder %s17, 1
      %p75 = por %p73, %p74
      %p76 = scmp.ne.s32.totalorder %s65, %s66
      %p77 = scmp.eq.s32.totalorder %s17, 0
      %p78 = por %p76, %p77
      %p79 = scmp.ne.s32.totalorder %s65, %s66
      %p80 = scmp.eq.s32.totalorder %s18, 1
      %p81 = por %p79, %p80
      %p83 = scmp.ne.s32.totalorder %s66, %s82
      %p84 = scmp.eq.s32.totalorder %s18, 0
      %p85 = por %p83, %p84
      %s86 = ssub.s32 %s19, %s31
      %p87 = scmp.eq.s32.totalorder %s86, 0
      %s89 = sadd.s32 %s88, 1
      %s90 = scalar_select %p87, %s88, %s89
      %p93 = pneg %p87
      %p94 = scmp.eq.s32.totalorder %s12, 1
      %p95 = por %p93, %p94
      %p96 = scmp.ne.s32.totalorder %s88, %s91
      %p97 = scmp.eq.s32.totalorder %s12, 0
      %p98 = por %p96, %p97
      %p99 = scmp.ne.s32.totalorder %s88, %s91
      %p100 = scmp.eq.s32.totalorder %s17, 1
      %p101 = por %p99, %p100
      %p102 = scmp.ne.s32.totalorder %s91, %s92
      %p103 = scmp.eq.s32.totalorder %s17, 0
      %p104 = por %p102, %p103
      %p105 = scmp.ne.s32.totalorder %s91, %s92
      %p106 = scmp.eq.s32.totalorder %s18, 1
      %p107 = por %p105, %p106
      %p109 = scmp.ne.s32.totalorder %s92, %s108
      %p110 = scmp.eq.s32.totalorder %s18, 0
      %p111 = por %p109, %p110
      %s112 = ssub.s32 %s19, %s31
      %s113 = ssub.s32 %s20, %s27
      %s114 = sor.u32 %s112, %s113
      %p115 = scmp.eq.s32.totalorder %s114, 0
      %s117 = sadd.s32 %s116, 1
      %s118 = scalar_select %p115, %s116, %s117
      %p121 = pneg %p115
      %p122 = scmp.eq.s32.totalorder %s12, 1
      %p123 = por %p121, %p122
      %p124 = scmp.ne.s32.totalorder %s116, %s119
      %p125 = scmp.eq.s32.totalorder %s12, 0
      %p126 = por %p124, %p125
      %p127 = scmp.ne.s32.totalorder %s116, %s119
      %p128 = scmp.eq.s32.totalorder %s17, 1
      %p129 = por %p127, %p128
      %p130 = scmp.ne.s32.totalorder %s119, %s120
      %p131 = scmp.eq.s32.totalorder %s17, 0
      %p132 = por %p130, %p131
      %p133 = scmp.ne.s32.totalorder %s119, %s120
      %p134 = scmp.eq.s32.totalorder %s18, 1
      %p135 = por %p133, %p134
      %p137 = scmp.ne.s32.totalorder %s120, %s136
      %p138 = scmp.eq.s32.totalorder %s18, 0
      %p139 = por %p137, %p138
      %p140 = scmp.le.s32.totalorder 1, %s12
      %p141 = scmp.lt.s32.totalorder %s12, 3
      %p142 = pnand %p140, %p141
      %p143 = pneg %p142
      // Predicated region
      $region9: #{geometry_affine.3} parent=5 // pred_check
        _
      $region10: #{geometry_affine.3} parent=5 // pred_check_branch
        %145 = sbr.rel (%p142) target = $region12
      $region11: #{geometry_affine.3} parent=5 // pred_region
        %s146 = ssub.s32 %s12, 1
      $region12: #{geometry_affine.3} parent=5 // pred_fallthru
        _
      %p147 = scmp.lt.s32.totalorder %s12, 2
      // Predicated region
      $region13: #{geometry_affine.3} parent=5 // pred_check
        %p148 = pneg %p147
      $region14: #{geometry_affine.3} parent=5 // pred_check_branch
        %150 = sbr.rel (%p148) target = $region16
      $region15: #{geometry_affine.3} parent=5 // pred_region
        // Predicated region
        $region17: #{geometry_affine.3} parent=15 // pred_check
          %p151 = pneg %p46
        $region18: #{geometry_affine.3} parent=15 // pred_check_branch
          %153 = sbr.rel (%p151) target = $region20
        $region19: #{geometry_affine.3} parent=15 // pred_region
          %p154 = scmp.lt.s32.totalorder %s19, 1
          %s155 = scalar_select %p154, %s19, 1
          %p156 = scmp.lt.s32.totalorder %s20, 0
          %s157 = scalar_select %p156, %s20, 0
          %s158 = sadd.s32 %s157, %s155
          %s159 = smul.addr %s158, 4
          %s160 = scalar_lea.vmem %s0, %s159
        $region20: #{geometry_affine.3} parent=15 // pred_fallthru
          _
        // Predicated region
        $region21: #{geometry_affine.3} parent=15 // pred_check
          %p161 = pneg %p72
        $region22: #{geometry_affine.3} parent=15 // pred_check_branch
          %163 = sbr.rel (%p161) target = $region24
        $region23: #{geometry_affine.3} parent=15 // pred_region
          %p164 = scmp.lt.s32.totalorder %s19, 1
          %s165 = scalar_select %p164, %s19, 1
          %s166 = smul.addr %s165, 4
          %s167 = scalar_lea.vmem %s1, %s166
        $region24: #{geometry_affine.3} parent=15 // pred_fallthru
          _
        // Predicated region
        $region25: #{geometry_affine.3} parent=15 // pred_check
          %p168 = pneg %p98
        $region26: #{geometry_affine.3} parent=15 // pred_check_branch
          %170 = sbr.rel (%p168) target = $region28
        $region27: #{geometry_affine.3} parent=15 // pred_region
          %p171 = scmp.lt.s32.totalorder %s19, 1
          %s172 = scalar_select %p171, %s19, 1
          %s173 = smul.addr %s172, 4
          %s174 = scalar_lea.vmem %s2, %s173
        $region28: #{geometry_affine.3} parent=15 // pred_fallthru
          _
      $region16: #{geometry_affine.3} parent=5 // pred_fallthru
        _
      %p175 = scmp.le.s32.totalorder 1, %s12
      %p176 = scmp.lt.s32.totalorder %s12, 3
      %p177 = pnand %p175, %p176
      %p178 = pneg %p177
      // Predicated region
      $region29: #{geometry_affine.3} parent=5 // pred_check
        _
      $region30: #{geometry_affine.3} parent=5 // pred_check_branch
        %180 = sbr.rel (%p177) target = $region32
      $region31: #{geometry_affine.3} parent=5 // pred_region
        %s181 = ssub.s32 %s12, 1
        %p182 = scmp.lt.s32.totalorder %s21, 1
        %s183 = scalar_select %p182, %s21, 1
        %p184 = scmp.lt.s32.totalorder %s22, 0
        %s185 = scalar_select %p184, %s22, 0
        %s186 = sadd.s32 %s185, %s183
        %s187 = smul.addr %s186, 4
        %s188 = scalar_lea.vmem %s0, %s187
        %p189 = pneg %p52
        %p190 = pneg %p49
        %p191 = scmp.lt.s32.totalorder %s21, 1
        %s192 = scalar_select %p191, %s21, 1
        %s193 = smul.addr %s192, 4
        %s194 = scalar_lea.vmem %s1, %s193
        %p195 = pneg %p78
        %p196 = pneg %p75
        %p197 = scmp.lt.s32.totalorder %s21, 1
        %s198 = scalar_select %p197, %s21, 1
        %s199 = smul.addr %s198, 4
        %s200 = scalar_lea.vmem %s2, %s199
        %p201 = pneg %p104
        %p202 = pneg %p101
        %p203 = pneg %p132
        %p204 = pneg %p129
        %s205 = sand.u32 %s119, 1
        %s206 = scalar_lea.sflag [#allocation3], %s205
        %s207 = sand.u32 %s119, 1
        %s208 = smul.addr %s207, 4
        %s209 = scalar_lea.vmem [#allocation2], %s208
        %p210 = scmp.lt.s32.totalorder %s21, 1
        %s211 = scalar_select %p210, %s21, 1
        %p212 = scmp.lt.s32.totalorder %s22, 0
        %s213 = scalar_select %p212, %s22, 0
        %s214 = sadd.s32 %s213, %s211
        %s215 = smul.addr %s214, 4
        %s216 = scalar_lea.vmem %s0, %s215
        %p217 = scmp.lt.s32.totalorder %s21, 1
        %s218 = scalar_select %p217, %s21, 1
        %s219 = smul.addr %s218, 4
        %s220 = scalar_lea.vmem %s1, %s219
        %p221 = scmp.lt.s32.totalorder %s21, 1
        %s222 = scalar_select %p221, %s21, 1
        %s223 = smul.addr %s222, 4
        %s224 = scalar_lea.vmem %s2, %s223
        %v225 = vld [vmem:[%s220] sm:$0xf]
        %v226 = vld [vmem:[%s216] sm:$0xf]
        %228 = vset.pattern.permute.xlu0 0
        %229 = vperm.xlu0 %228, %v225
        %v230 = vpop.permute.xlu0 %229
        %v232 = vmul.f32 %v230, %v226
        %v233 = vld [vmem:[%s224] sm:$0xf]
        %235 = vset.pattern.permute.xlu0 0
        %236 = vperm.xlu0 %235, %v233
        %v237 = vpop.permute.xlu0 %236
        %v239 = vadd.f32 %v232, %v237
        %vm240 = vcmask 125952
        %241 = vst.msk [vmem:[%s209] sm:$0xf] %vm240, %v239
        %s242 = sand.u32 %s119, 1
        %s243 = scalar_lea.sflag [#allocation3], %s242
        %s244 = sand.u32 %s119, 1
        %s245 = smul.addr %s244, 4
        %s246 = scalar_lea.vmem [#allocation2], %s245
        // Predicated region
        $region33: #{geometry_affine.3} parent=31 // pred_check
          %p247 = pneg %p129
        $region34: #{geometry_affine.3} parent=31 // pred_check_branch
          %249 = sbr.rel (%p247) target = $region36
        $region35: #{geometry_affine.3} parent=31 // pred_region
          %s251 = ssub.s32 64, 64
          %252 = vsyncadd %s243, %s251
          %s253 = sadd.s32 %s22, %s21
          %s254 = smul.addr %s253, 64
          %s255 = scalar_lea.hbm %s3, %s254
          %s257 = sshll.u32 %s246, 4
          %s258 = int_to_ptr.vmem [resolvable:$true] %s257
          %260 = dma.vmem_to_hbm [thread:$0]  %s258, 64, %s255, %s243
        $region36: #{geometry_affine.3} parent=31 // pred_fallthru
          _
      $region32: #{geometry_affine.3} parent=5 // pred_fallthru
        _
      %p261 = scmp.le.s32.totalorder 2, %s12
      // Predicated region
      $region37: #{geometry_affine.3} parent=5 // pred_check
        %p262 = pneg %p261
      $region38: #{geometry_affine.3} parent=5 // pred_check_branch
        %264 = sbr.rel (%p262) target = $region40
      $region39: #{geometry_affine.3} parent=5 // pred_region
        %s265 = ssub.s32 %s12, 2
        // Predicated region
        $region41: #{geometry_affine.3} parent=39 // pred_check
          %p266 = pneg %p135
        $region42: #{geometry_affine.3} parent=39 // pred_check_branch
          %268 = sbr.rel (%p266) target = $region44
        $region43: #{geometry_affine.3} parent=39 // pred_region
          %s269 = sand.u32 %s120, 1
          %s270 = scalar_lea.sflag [#allocation3], %s269
          %s271 = sand.u32 %s120, 1
          %s272 = smul.addr %s271, 4
          %s273 = scalar_lea.vmem [#allocation2], %s272
          %274 = dma.done %s270, 64
        $region44: #{geometry_affine.3} parent=39 // pred_fallthru
          _
      $region40: #{geometry_affine.3} parent=5 // pred_fallthru
        _
    $region6: #{geometry_affine.3} parent=1 // loop_footer
      %s16 = sadd.s32 1, %s12
    $region7: #{geometry_affine.3} parent=1 // loop_footer_branch
      %11 = sbr.rel target = $region3
    $region8: #{geometry_affine.3} parent=1 // loop_exit
      _
    %275 = vsyncpa [#allocation3], 1
    %s276 = scalar_lea.sflag [#allocation3], 1
    %277 = vsyncpa %s276, 1

</llo_original>
